<compile_context>
chip_gen: v6e
topology: v6e:2x2x1
jax: 0.10.0
libtpu: 0.0.40
codegen_flags: <defaults>
</compile_context>

<pallas_src>
import jax
import jax.numpy as jnp
from jax import lax
from jax.experimental import pallas as pl
from jax.experimental.pallas import tpu as pltpu


def _round_up(x, m):
    return ((x + m - 1) // m) * m


def _cdiv(a, b):
    return (a + b - 1) // b


# --------------------------------------------------------------------------
# One-shot kernel: transposed node-level partials (hoisted out of the edge grid)
# --------------------------------------------------------------------------
def _node_partials_kernel(h_ref, w1_ref, ps_ref, pd_ref):
    # h_ref: (N, F), w1_ref: (2F, F); outputs: transposed partials (F, N).
    f = h_ref.shape[1]
    h = h_ref[...]
    w1 = w1_ref[...]
    dn = (((0,), (1,)), ((), ()))  # contract W1's input dim with h's feature dim
    ps_ref[...] = lax.dot_general(
        w1[:f, :], h, dimension_numbers=dn,
        preferred_element_type=jnp.float32).astype(ps_ref.dtype)
    pd_ref[...] = lax.dot_general(
        w1[f:, :], h, dimension_numbers=dn,
        preferred_element_type=jnp.float32).astype(pd_ref.dtype)


# --------------------------------------------------------------------------
# Per-edge kernel: gather + bias + relu + W2, fully transposed (edge axis = lanes)
# --------------------------------------------------------------------------
def _edge_mlp_kernel(src_ref, dst_ref, ps_ref, pd_ref, b1_ref, w2t_ref, b2_ref,
                     o_ref):
    # src_ref/dst_ref: (1, TE) int32 node ids (lane-dense)
    # ps_ref/pd_ref  : (F, N)  transposed node partials (VMEM resident)
    # b1_ref         : (F, 1), w2t_ref: (2, F), b2_ref: (2, 1)
    # o_ref          : (2, TE) transposed scores -> unmasked lane-dense stores
    f, n = ps_ref.shape
    te = src_ref.shape[1]

    # One-hot row gather on the MXU with the edge axis as the MXU output axis.
    # HIGHEST precision makes this an exact gather for f32 partials.
    node_iota = lax.broadcasted_iota(jnp.int32, (n, te), 0)
    oh_src = (src_ref[...] == node_iota).astype(jnp.float32)           # (N, TE)
    oh_dst = (dst_ref[...] == node_iota).astype(jnp.float32)           # (N, TE)
    g_src = jnp.dot(ps_ref[...], oh_src,
                    preferred_element_type=jnp.float32,
                    precision=lax.Precision.HIGHEST)                   # (F, TE)
    g_dst = jnp.dot(pd_ref[...], oh_dst,
                    preferred_element_type=jnp.float32,
                    precision=lax.Precision.HIGHEST)                   # (F, TE)

    hid = jnp.maximum(g_src + g_dst + b1_ref[...], 0.0)                # (F, TE)

    scores_t = jnp.dot(w2t_ref[...], hid,
                       preferred_element_type=jnp.float32) + b2_ref[...]  # (2, TE)
    o_ref[...] = scores_t.astype(o_ref.dtype)


def _choose_edge_tiling(num_edges, tile_e):
    """Remainder-aware, 128-aligned edge tiling; >=2 tiles when E >= 256."""
    tile_cap = max(128, _round_up(tile_e, 128))
    e_min = _round_up(max(num_edges, 1), 128)
    n_tiles = _cdiv(e_min, tile_cap)
    if e_min >= 256:                       # let v7x's second TensorCore help
        n_tiles = max(n_tiles, 2)
    tile = _round_up(_cdiv(e_min, n_tiles), 128)
    n_tiles = _cdiv(e_min, tile)
    return tile, n_tiles * tile


def mlp_edge_scores(src_idx, dst_idx, h, w1, b1, w2, b2, *, tile_e=1024):
    """Edge scores for edges (src_idx[i], dst_idx[i]). Returns (E, 2).

    tile_e may be raised to 2048-4096 on v5e/v6e for very large E; keep it
    ~1024-2048 on v7x (64 MiB VMEM, two TensorCores).
    """
    E = src_idx.shape[0]
    N, F = h.shape
    assert w1.shape == (2 * F, F) and w2.shape == (F, 2)

    # ---- one-shot node partials (computed once, not per edge tile) ----
    p_src_t, p_dst_t = pl.pallas_call(
        _node_partials_kernel,
        out_shape=(jax.ShapeDtypeStruct((F, N), jnp.float32),
                   jax.ShapeDtypeStruct((F, N), jnp.float32)),
        grid=(1,),
        in_specs=[pl.BlockSpec((N, F), lambda i: (0, 0)),
                  pl.BlockSpec((2 * F, F), lambda i: (0, 0))],
        out_specs=(pl.BlockSpec((F, N), lambda i: (0, 0)),
                   pl.BlockSpec((F, N), lambda i: (0, 0))),
    )(h, w1)

    # ---- per-edge pipeline ----
    tile, e_pad = _choose_edge_tiling(E, tile_e)
    src_p = jnp.pad(src_idx.astype(jnp.int32), (0, e_pad - E)).reshape(1, e_pad)
    dst_p = jnp.pad(dst_idx.astype(jnp.int32), (0, e_pad - E)).reshape(1, e_pad)
    b1_2d = b1.reshape(F, 1)
    w2t = w2.T                              # (2, F)
    b2_2d = b2.reshape(2, 1)

    grid = (e_pad // tile,)
    scores_t = pl.pallas_call(
        _edge_mlp_kernel,
        out_shape=jax.ShapeDtypeStruct((2, e_pad), h.dtype),
        grid_spec=pltpu.PrefetchScalarGridSpec(
            num_scalar_prefetch=0,
            grid=grid,
            in_specs=[
                pl.BlockSpec((1, tile), lambda i: (0, i)),     # src ids (lane-dense)
                pl.BlockSpec((1, tile), lambda i: (0, i)),     # dst ids (lane-dense)
                pl.BlockSpec((F, N), lambda i: (0, 0)),        # p_src^T (resident)
                pl.BlockSpec((F, N), lambda i: (0, 0)),        # p_dst^T (resident)
                pl.BlockSpec((F, 1), lambda i: (0, 0)),        # b1
                pl.BlockSpec((2, F), lambda i: (0, 0)),        # W2^T
                pl.BlockSpec((2, 1), lambda i: (0, 0)),        # b2
            ],
            out_specs=pl.BlockSpec((2, tile), lambda i: (0, i)),
        ),
        compiler_params=pltpu.CompilerParams(
            dimension_semantics=("parallel",),
            vmem_limit_bytes=32 * 1024 * 1024,  # footprint is a few hundred KiB
        ),
    )(src_p, dst_p, p_src_t, p_dst_t, b1_2d, w2t, b2_2d)

    return scores_t[:, :E].T                # (E, 2)


def my_mlp_predictor_forward(src_idx, dst_idx, h, params):
    """Full forward of MyMLPPredictor: graph given as (src_idx, dst_idx)."""
    return mlp_edge_scores(src_idx, dst_idx, h,
                           params["w1"], params["b1"],
                           params["w2"], params["b2"])


def init_params(key, h_feats):
    """Deterministic synthetic init. Weights stored as (in, out)."""
    k1, k2, k3, k4 = jax.random.split(key, 4)
    w1 = jax.random.normal(k1, (2 * h_feats, h_feats), jnp.float32) * 0.1
    b1 = jax.random.normal(k2, (h_feats,), jnp.float32) * 0.1
    w2 = jax.random.normal(k3, (h_feats, 2), jnp.float32) * 0.1
    b2 = jax.random.normal(k4, (2,), jnp.float32) * 0.1
    return {"w1": w1, "b1": b1, "w2": w2, "b2": b2}


def _reference(src_idx, dst_idx, h, p):
    x = jnp.concatenate([h[src_idx], h[dst_idx]], axis=1)
    hid = jnp.maximum(x @ p["w1"] + p["b1"], 0.0)
    return hid @ p["w2"] + p["b2"]


if __name__ == "__main__":
    h_feats = 32      # hidden feature size F
    num_nodes = 16
    num_edges = 128

    key = jax.random.PRNGKey(0)
    k_h, k_src, k_dst, k_p = jax.random.split(key, 4)

    h = jax.random.normal(k_h, (num_nodes, h_feats), jnp.float32)
    src_idx = jax.random.randint(k_src, (num_edges,), 0, num_nodes, jnp.int32)
    dst_idx = jax.random.randint(k_dst, (num_edges,), 0, num_nodes, jnp.int32)
    params = init_params(k_p, h_feats)

    scores = my_mlp_predictor_forward(src_idx, dst_idx, h, params)
    scores = jax.block_until_ready(scores)

    ref = _reference(src_idx, dst_idx, h, params)
    assert scores.shape == (num_edges, 2)
    assert jnp.allclose(scores, ref, atol=1e-4, rtol=1e-4), float(
        jnp.max(jnp.abs(scores - ref)))

    print("KERNEL_OK")
</pallas_src>

<mosaic_0001>
module attributes {stable_mosaic.version = 11 : i64} {
  func.func @_node_partials_kernel(%arg0: i32, %arg1: memref<16x32xf32, #tpu.memory_space<vmem>>, %arg2: memref<64x32xf32, #tpu.memory_space<vmem>>, %arg3: memref<32x16xf32, #tpu.memory_space<vmem>>, %arg4: memref<32x16xf32, #tpu.memory_space<vmem>>) attributes {dimension_semantics = [#tpu.dimension_semantics<arbitrary>], iteration_bounds = array<i64: 1>, scalar_prefetch = 0 : i64, scratch_operands = 0 : i64, tpu.core_type = #tpu.core_type<tc>, window_params = [{pipeline_mode = #tpu.pipeline_mode<synchronous>, transform_indices = @transform_0, window_bounds = array<i64: 16, 32>}, {pipeline_mode = #tpu.pipeline_mode<synchronous>, transform_indices = @transform_1, window_bounds = array<i64: 64, 32>}, {pipeline_mode = #tpu.pipeline_mode<synchronous>, transform_indices = @transform_2, window_bounds = array<i64: 32, 16>}, {pipeline_mode = #tpu.pipeline_mode<synchronous>, transform_indices = @transform_3, window_bounds = array<i64: 32, 16>}]} {
    %c0 = arith.constant 0 : index
    %c0_0 = arith.constant 0 : index
    %0 = vector.load %arg1[%c0, %c0_0] : memref<16x32xf32, #tpu.memory_space<vmem>>, vector<16x32xf32>
    %c0_1 = arith.constant 0 : index
    %c0_2 = arith.constant 0 : index
    %1 = vector.load %arg2[%c0_1, %c0_2] : memref<64x32xf32, #tpu.memory_space<vmem>>, vector<64x32xf32>
    %2 = vector.extract_strided_slice %1 {offsets = [0, 0], sizes = [32, 32], strides = [1, 1]} : vector<64x32xf32> to vector<32x32xf32>
    %cst = arith.constant dense<0.000000e+00> : vector<32x16xf32>
    %3 = tpu.matmul %2, %0, %cst {dimension_numbers = #tpu.dot_dimension_numbers<[0], [1], [1], [0], [0, 1, 1, 0], [], []>} : vector<32x32xf32>, vector<16x32xf32>, vector<32x16xf32> -> vector<32x16xf32>
    %c0_3 = arith.constant 0 : index
    %c0_4 = arith.constant 0 : index
    %4 = vector.load %arg3[%c0_3, %c0_4] : memref<32x16xf32, #tpu.memory_space<vmem>>, vector<32x16xf32>
    tpu.vector_store %arg3[%c0_3, %c0_4], %3 {strides = array<i32>} : memref<32x16xf32, #tpu.memory_space<vmem>>, vector<32x16xf32>,
    %5 = vector.extract_strided_slice %1 {offsets = [32, 0], sizes = [32, 32], strides = [1, 1]} : vector<64x32xf32> to vector<32x32xf32>
    %cst_5 = arith.constant dense<0.000000e+00> : vector<32x16xf32>
    %6 = tpu.matmul %5, %0, %cst_5 {dimension_numbers = #tpu.dot_dimension_numbers<[0], [1], [1], [0], [0, 1, 1, 0], [], []>} : vector<32x32xf32>, vector<16x32xf32>, vector<32x16xf32> -> vector<32x16xf32>
    %c0_6 = arith.constant 0 : index
    %c0_7 = arith.constant 0 : index
    %7 = vector.load %arg4[%c0_6, %c0_7] : memref<32x16xf32, #tpu.memory_space<vmem>>, vector<32x16xf32>
    tpu.vector_store %arg4[%c0_6, %c0_7], %6 {strides = array<i32>} : memref<32x16xf32, #tpu.memory_space<vmem>>, vector<32x16xf32>,
    return
  }
  func.func @transform_0(%arg0: i32) -> (i32, i32) {
    %c0_i32 = arith.constant 0 : i32
    %c0_i32_0 = arith.constant 0 : i32
    %c0_i32_1 = arith.constant 0 : i32
    return %c0_i32, %c0_i32_0 : i32, i32
  }
  func.func @transform_1(%arg0: i32) -> (i32, i32) {
    %c0_i32 = arith.constant 0 : i32
    %c0_i32_0 = arith.constant 0 : i32
    %c0_i32_1 = arith.constant 0 : i32
    return %c0_i32, %c0_i32_0 : i32, i32
  }
  func.func @transform_2(%arg0: i32) -> (i32, i32) {
    %c0_i32 = arith.constant 0 : i32
    %c0_i32_0 = arith.constant 0 : i32
    %c0_i32_1 = arith.constant 0 : i32
    return %c0_i32, %c0_i32_0 : i32, i32
  }
  func.func @transform_3(%arg0: i32) -> (i32, i32) {
    %c0_i32 = arith.constant 0 : i32
    %c0_i32_0 = arith.constant 0 : i32
    %c0_i32_1 = arith.constant 0 : i32
    return %c0_i32, %c0_i32_0 : i32, i32
  }
}

</mosaic_0001>

<llo_original>
// kernel: tpu_custom_call.1
$region0: #{tpu_custom_call.1}
  #allocation0 [shape = 'u32[]', space=smem, size = 0x4, offset = 0x4, fixed_abs, tag = 'smem constant byte address 0x4 - core index']
  #allocation1 [shape = 'u32[144,128]{1,0:T(1,128)}', space=vmem, size = 0x12000, scoped, tag = 'internal scratch']
  %s0 = inlined_call_operand.vmem [shape: f32[16,32], index: 0, kind: input, shape index: {}]
  %s1 = inlined_call_operand.vmem [shape: f32[64,32], index: 1, kind: input, shape index: {}]
  %s2 = inlined_call_operand.vmem [shape: f32[32,16], index: 2, kind: output, shape index: {0}]
  %s3 = inlined_call_operand.vmem [shape: f32[32,16], index: 3, kind: output, shape index: {1}]
  %4 = xla_tuple %s2, %s3
  %s5 = sld [smem:[#allocation0]]
  $region26: #{tpu_custom_call.1} parent=0
    _
  %s7 = ssub.s32 1, %s5
  %s8 = scalar_select 0, %s7, %s5
  // Predicated region
  $region2: #{tpu_custom_call.1} parent=0 // pred_check
    _
  $region3: #{tpu_custom_call.1} parent=0 // pred_check_branch
    %10 = sbr.rel (0) target = $region5
  $region4: #{tpu_custom_call.1} parent=0 // pred_region
    _
  $region5: #{tpu_custom_call.1} parent=0 // pred_fallthru
    _
  // Predicated region
  $region6: #{tpu_custom_call.1} parent=0 // pred_check
    _
  $region7: #{tpu_custom_call.1} parent=0 // pred_check_branch
    %12 = sbr.rel (0) target = $region9
  $region8: #{tpu_custom_call.1} parent=0 // pred_region
    _
  $region9: #{tpu_custom_call.1} parent=0 // pred_fallthru
    _
  %v13 = vld [vmem:[%s0] sm:$0xff]
  %v14 = vld [vmem:[%s0 + $0x8] sm:$0xff]
  %v15 = vld [vmem:[%s1] sm:$0xff]
  %v16 = vld [vmem:[%s1 + $0x8] sm:$0xff]
  %v17 = vld [vmem:[%s1 + $0x10] sm:$0xff]
  %v18 = vld [vmem:[%s1 + $0x18] sm:$0xff]
  %v19 = vld [vmem:[%s1 + $0x20] sm:$0xff]
  %v20 = vld [vmem:[%s1 + $0x28] sm:$0xff]
  %v21 = vld [vmem:[%s1 + $0x30] sm:$0xff]
  %v22 = vld [vmem:[%s1 + $0x38] sm:$0xff]
  %23 = vxpose.xlu0.b32.start [1/16] %v15, 128
  %24 = vxpose.xlu0.b32.cont [2/16] %v16, 128
  %25 = vxpose.xlu0.b32.cont [3/16] %v17, 128
  %26 = vxpose.xlu0.b32.cont [4/16] %v18, 128
  %27 = vxpose.xlu0.b32.cont [5/16] 0.0, 128
  %28 = vxpose.xlu0.b32.cont [6/16] 0.0, 128
  %29 = vxpose.xlu0.b32.cont [7/16] 0.0, 128
  %30 = vxpose.xlu0.b32.cont [8/16] 0.0, 128
  %31 = vxpose.xlu0.b32.cont [9/16] 0.0, 128
  %32 = vxpose.xlu0.b32.cont [10/16] 0.0, 128
  %33 = vxpose.xlu0.b32.cont [11/16] 0.0, 128
  %34 = vxpose.xlu0.b32.cont [12/16] 0.0, 128
  %35 = vxpose.xlu0.b32.cont [13/16] 0.0, 128
  %36 = vxpose.xlu0.b32.cont [14/16] 0.0, 128
  %37 = vxpose.xlu0.b32.cont [15/16] 0.0, 128
  %38 = vxpose.xlu0.b32.end [16/16] 0.0, 128
  %v39 = vpop.trf.xlu0
  %v40 = vpop.trf.xlu0
  %v41 = vpop.trf.xlu0
  %v42 = vpop.trf.xlu0
  %v43 = vpop.trf.xlu0
  %v44 = vpop.trf.xlu0
  %v45 = vpop.trf.xlu0
  %v46 = vpop.trf.xlu0
  %v47 = vpop.trf.xlu0
  %v48 = vpop.trf.xlu0
  %v49 = vpop.trf.xlu0
  %v50 = vpop.trf.xlu0
  %v51 = vpop.trf.xlu0
  %v52 = vpop.trf.xlu0
  %v53 = vpop.trf.xlu0
  %v54 = vpop.trf.xlu0
  %vm55 = vcmask 261120
  %v57 = vsel %vm55, %v39, 0
  %v60 = vsel %vm55, %v40, 0
  %v63 = vsel %vm55, %v41, 0
  %v66 = vsel %vm55, %v42, 0
  %v69 = vsel %vm55, %v13, 0
  %v72 = vsel %vm55, %v14, 0
  %74 = vmatprep.subr.mxu0 0.0
  %75 = vmatpush1.xpose.msra.mxu0 0.0
  %76 = vmatprep.subr.mxu0 0.0
  %77 = vmatpush1.xpose.msra.mxu0 0.0
  %78 = vmatprep.subr.mxu0 0.0
  %79 = vmatpush1.xpose.msra.mxu0 0.0
  %80 = vmatprep.subr.mxu0 0.0
  %81 = vmatpush1.xpose.msra.mxu0 0.0
  %82 = vmatprep.subr.mxu0 0.0
  %83 = vmatpush1.xpose.msra.mxu0 0.0
  %84 = vmatprep.subr.mxu0 0.0
  %85 = vmatpush1.xpose.msra.mxu0 0.0
  %86 = vmatprep.subr.mxu0 0.0
  %87 = vmatpush1.xpose.msra.mxu0 0.0
  %88 = vmatprep.subr.mxu0 0.0
  %89 = vmatpush1.xpose.msra.mxu0 0.0
  %90 = vmatprep.subr.mxu0 0.0
  %91 = vmatpush1.xpose.msra.mxu0 0.0
  %92 = vmatprep.subr.mxu0 0.0
  %93 = vmatpush1.xpose.msra.mxu0 0.0
  %94 = vmatprep.subr.mxu0 0.0
  %95 = vmatpush1.xpose.msra.mxu0 0.0
  %96 = vmatprep.subr.mxu0 0.0
  %97 = vmatpush1.xpose.msra.mxu0 0.0
  %98 = vmatprep.subr.mxu0 0.0
  %99 = vmatpush1.xpose.msra.mxu0 0.0
  %100 = vmatprep.subr.mxu0 0.0
  %101 = vmatpush1.xpose.msra.mxu0 0.0
  %102 = vmatprep.subr.mxu0 0.0
  %103 = vmatpush1.xpose.msra.mxu0 %v72
  %104 = vmatprep.subr.mxu0 0.0
  %105 = vmatpush1.xpose.msra.mxu0 %v69
  %106 = vmatprep.subr.mxu0 0.0
  %107 = vmatpush2.xpose.msra.mxu0 0.0
  %108 = vmatprep.subr.mxu0 0.0
  %109 = vmatpush2.xpose.msra.mxu0 0.0
  %110 = vmatprep.subr.mxu0 0.0
  %111 = vmatpush2.xpose.msra.mxu0 0.0
  %112 = vmatprep.subr.mxu0 0.0
  %113 = vmatpush2.xpose.msra.mxu0 0.0
  %114 = vmatprep.subr.mxu0 0.0
  %115 = vmatpush2.xpose.msra.mxu0 0.0
  %116 = vmatprep.subr.mxu0 0.0
  %117 = vmatpush2.xpose.msra.mxu0 0.0
  %118 = vmatprep.subr.mxu0 0.0
  %119 = vmatpush2.xpose.msra.mxu0 0.0
  %120 = vmatprep.subr.mxu0 0.0
  %121 = vmatpush2.xpose.msra.mxu0 0.0
  %122 = vmatprep.subr.mxu0 0.0
  %123 = vmatpush2.xpose.msra.mxu0 0.0
  %124 = vmatprep.subr.mxu0 0.0
  %125 = vmatpush2.xpose.msra.mxu0 0.0
  %126 = vmatprep.subr.mxu0 0.0
  %127 = vmatpush2.xpose.msra.mxu0 0.0
  %128 = vmatprep.subr.mxu0 0.0
  %129 = vmatpush2.xpose.msra.mxu0 0.0
  %130 = vmatprep.subr.mxu0 0.0
  %131 = vmatpush2.xpose.msra.mxu0 0.0
  %132 = vmatprep.subr.mxu0 0.0
  %133 = vmatpush2.xpose.msra.mxu0 0.0
  %134 = vmatprep.subr.mxu0 0.0
  %135 = vmatpush2.xpose.msra.mxu0 0.0
  %136 = vmatprep.subr.mxu0 0.0
  %137 = vmatpush2.xpose.msra.mxu0 0.0
  %138 = vmatprep.mubr.f32.mxu0 0.0
  %139 = vmatmul.mubr.f32.gmra.mxu0 %v57
  %v140 = vpop.f32.mrf.mxu0
  %v141 = vadd.f32 0.0, %v140
  %v142 = vpop.f32.mrf.mxu0
  %143 = vmatprep.mubr.f32.mxu0 0.0
  %144 = vmatmul.mubr.f32.gmra.mxu0 %v60
  %v145 = vpop.f32.mrf.mxu0
  %v146 = vadd.f32 0.0, %v145
  %v147 = vpop.f32.mrf.mxu0
  %148 = vmatprep.mubr.f32.mxu0 0.0
  %149 = vmatmul.mubr.f32.gmra.mxu0 %v63
  %v150 = vpop.f32.mrf.mxu0
  %v151 = vadd.f32 0.0, %v150
  %v152 = vpop.f32.mrf.mxu0
  %153 = vmatprep.mubr.f32.mxu0 0.0
  %154 = vmatmul.mubr.f32.gmra.mxu0 %v66
  %v155 = vpop.f32.mrf.mxu0
  %v156 = vadd.f32 0.0, %v155
  %v157 = vpop.f32.mrf.mxu0
  %158 = vdwg.mxu0
  %vm159 = vcmask 130048
  %160 = vst.msk [vmem:[%s2] sm:$0xff] %vm159, %v141
  %161 = vst.msk [vmem:[%s2 + $0x8] sm:$0xff] %vm159, %v146
  %162 = vst.msk [vmem:[%s2 + $0x10] sm:$0xff] %vm159, %v151
  %163 = vst.msk [vmem:[%s2 + $0x18] sm:$0xff] %vm159, %v156
  %164 = vxpose.xlu0.b32.start [1/16] %v19, 128
  %165 = vxpose.xlu0.b32.cont [2/16] %v20, 128
  %166 = vxpose.xlu0.b32.cont [3/16] %v21, 128
  %167 = vxpose.xlu0.b32.cont [4/16] %v22, 128
  %168 = vxpose.xlu0.b32.cont [5/16] 0.0, 128
  %169 = vxpose.xlu0.b32.cont [6/16] 0.0, 128
  %170 = vxpose.xlu0.b32.cont [7/16] 0.0, 128
  %171 = vxpose.xlu0.b32.cont [8/16] 0.0, 128
  %172 = vxpose.xlu0.b32.cont [9/16] 0.0, 128
  %173 = vxpose.xlu0.b32.cont [10/16] 0.0, 128
  %174 = vxpose.xlu0.b32.cont [11/16] 0.0, 128
  %175 = vxpose.xlu0.b32.cont [12/16] 0.0, 128
  %176 = vxpose.xlu0.b32.cont [13/16] 0.0, 128
  %177 = vxpose.xlu0.b32.cont [14/16] 0.0, 128
  %178 = vxpose.xlu0.b32.cont [15/16] 0.0, 128
  %179 = vxpose.xlu0.b32.end [16/16] 0.0, 128
  %v180 = vpop.trf.xlu0
  %v181 = vpop.trf.xlu0
  %v182 = vpop.trf.xlu0
  %v183 = vpop.trf.xlu0
  %v184 = vpop.trf.xlu0
  %v185 = vpop.trf.xlu0
  %v186 = vpop.trf.xlu0
  %v187 = vpop.trf.xlu0
  %v188 = vpop.trf.xlu0
  %v189 = vpop.trf.xlu0
  %v190 = vpop.trf.xlu0
  %v191 = vpop.trf.xlu0
  %v192 = vpop.trf.xlu0
  %v193 = vpop.trf.xlu0
  %v194 = vpop.trf.xlu0
  %v195 = vpop.trf.xlu0
  %v197 = vsel %vm55, %v180, 0
  %v200 = vsel %vm55, %v181, 0
  %v203 = vsel %vm55, %v182, 0
  %v206 = vsel %vm55, %v183, 0
  %208 = vmatprep.subr.mxu0 0.0
  %209 = vmatpush1.xpose.msra.mxu0 0.0
  %210 = vmatprep.subr.mxu0 0.0
  %211 = vmatpush1.xpose.msra.mxu0 0.0
  %212 = vmatprep.subr.mxu0 0.0
  %213 = vmatpush1.xpose.msra.mxu0 0.0
  %214 = vmatprep.subr.mxu0 0.0
  %215 = vmatpush1.xpose.msra.mxu0 0.0
  %216 = vmatprep.subr.mxu0 0.0
  %217 = vmatpush1.xpose.msra.mxu0 0.0
  %218 = vmatprep.subr.mxu0 0.0
  %219 = vmatpush1.xpose.msra.mxu0 0.0
  %220 = vmatprep.subr.mxu0 0.0
  %221 = vmatpush1.xpose.msra.mxu0 0.0
  %222 = vmatprep.subr.mxu0 0.0
  %223 = vmatpush1.xpose.msra.mxu0 0.0
  %224 = vmatprep.subr.mxu0 0.0
  %225 = vmatpush1.xpose.msra.mxu0 0.0
  %226 = vmatprep.subr.mxu0 0.0
  %227 = vmatpush1.xpose.msra.mxu0 0.0
  %228 = vmatprep.subr.mxu0 0.0
  %229 = vmatpush1.xpose.msra.mxu0 0.0
  %230 = vmatprep.subr.mxu0 0.0
  %231 = vmatpush1.xpose.msra.mxu0 0.0
  %232 = vmatprep.subr.mxu0 0.0
  %233 = vmatpush1.xpose.msra.mxu0 0.0
  %234 = vmatprep.subr.mxu0 0.0
  %235 = vmatpush1.xpose.msra.mxu0 0.0
  %236 = vmatprep.subr.mxu0 0.0
  %237 = vmatpush1.xpose.msra.mxu0 %v72
  %238 = vmatprep.subr.mxu0 0.0
  %239 = vmatpush1.xpose.msra.mxu0 %v69
  %240 = vmatprep.subr.mxu0 0.0
  %241 = vmatpush2.xpose.msra.mxu0 0.0
  %242 = vmatprep.subr.mxu0 0.0
  %243 = vmatpush2.xpose.msra.mxu0 0.0
  %244 = vmatprep.subr.mxu0 0.0
  %245 = vmatpush2.xpose.msra.mxu0 0.0
  %246 = vmatprep.subr.mxu0 0.0
  %247 = vmatpush2.xpose.msra.mxu0 0.0
  %248 = vmatprep.subr.mxu0 0.0
  %249 = vmatpush2.xpose.msra.mxu0 0.0
  %250 = vmatprep.subr.mxu0 0.0
  %251 = vmatpush2.xpose.msra.mxu0 0.0
  %252 = vmatprep.subr.mxu0 0.0
  %253 = vmatpush2.xpose.msra.mxu0 0.0
  %254 = vmatprep.subr.mxu0 0.0
  %255 = vmatpush2.xpose.msra.mxu0 0.0
  %256 = vmatprep.subr.mxu0 0.0
  %257 = vmatpush2.xpose.msra.mxu0 0.0
  %258 = vmatprep.subr.mxu0 0.0
  %259 = vmatpush2.xpose.msra.mxu0 0.0
  %260 = vmatprep.subr.mxu0 0.0
  %261 = vmatpush2.xpose.msra.mxu0 0.0
  %262 = vmatprep.subr.mxu0 0.0
  %263 = vmatpush2.xpose.msra.mxu0 0.0
  %264 = vmatprep.subr.mxu0 0.0
  %265 = vmatpush2.xpose.msra.mxu0 0.0
  %266 = vmatprep.subr.mxu0 0.0
  %267 = vmatpush2.xpose.msra.mxu0 0.0
  %268 = vmatprep.subr.mxu0 0.0
  %269 = vmatpush2.xpose.msra.mxu0 0.0
  %270 = vmatprep.subr.mxu0 0.0
  %271 = vmatpush2.xpose.msra.mxu0 0.0
  %272 = vmatprep.mubr.f32.mxu0 0.0
  %273 = vmatmul.mubr.f32.gmra.mxu0 %v197
  %v274 = vpop.f32.mrf.mxu0
  %v275 = vadd.f32 0.0, %v274
  %v276 = vpop.f32.mrf.mxu0
  %277 = vmatprep.mubr.f32.mxu0 0.0
  %278 = vmatmul.mubr.f32.gmra.mxu0 %v200
  %v279 = vpop.f32.mrf.mxu0
  %v280 = vadd.f32 0.0, %v279
  %v281 = vpop.f32.mrf.mxu0
  %282 = vmatprep.mubr.f32.mxu0 0.0
  %283 = vmatmul.mubr.f32.gmra.mxu0 %v203
  %v284 = vpop.f32.mrf.mxu0
  %v285 = vadd.f32 0.0, %v284
  %v286 = vpop.f32.mrf.mxu0
  %287 = vmatprep.mubr.f32.mxu0 0.0
  %288 = vmatmul.mubr.f32.gmra.mxu0 %v206
  %v289 = vpop.f32.mrf.mxu0
  %v290 = vadd.f32 0.0, %v289
  %v291 = vpop.f32.mrf.mxu0
  %292 = vdwg.mxu0
  %293 = vst.msk [vmem:[%s3] sm:$0xff] %vm159, %v275
  %294 = vst.msk [vmem:[%s3 + $0x8] sm:$0xff] %vm159, %v280
  %295 = vst.msk [vmem:[%s3 + $0x10] sm:$0xff] %vm159, %v285
  %296 = vst.msk [vmem:[%s3 + $0x18] sm:$0xff] %vm159, %v290
  // Predicated region
  $region10: #{tpu_custom_call.1} parent=0 // pred_check
    _
  $region11: #{tpu_custom_call.1} parent=0 // pred_check_branch
    %298 = sbr.rel (0) target = $region13
  $region12: #{tpu_custom_call.1} parent=0 // pred_region
    _
  $region13: #{tpu_custom_call.1} parent=0 // pred_fallthru
    _
  // Predicated region
  $region14: #{tpu_custom_call.1} parent=0 // pred_check
    _
  $region15: #{tpu_custom_call.1} parent=0 // pred_check_branch
    %300 = sbr.rel (0) target = $region17
  $region16: #{tpu_custom_call.1} parent=0 // pred_region
    _
  $region17: #{tpu_custom_call.1} parent=0 // pred_fallthru
    _
  // Predicated region
  $region18: #{tpu_custom_call.1} parent=0 // pred_check
    _
  $region19: #{tpu_custom_call.1} parent=0 // pred_check_branch
    %302 = sbr.rel (0) target = $region21
  $region20: #{tpu_custom_call.1} parent=0 // pred_region
    _
  $region21: #{tpu_custom_call.1} parent=0 // pred_fallthru
    _
  // Predicated region
  $region22: #{tpu_custom_call.1} parent=0 // pred_check
    _
  $region23: #{tpu_custom_call.1} parent=0 // pred_check_branch
    %304 = sbr.rel (0) target = $region25
  $region24: #{tpu_custom_call.1} parent=0 // pred_region
    _
  $region25: #{tpu_custom_call.1} parent=0 // pred_fallthru
    _

</llo_original>
